<compile_context>
chip_gen: v7x
topology: tpu7x:2x2x1
jax: 0.10.0
libtpu: 0.0.40
codegen_flags: <defaults>
</compile_context>

<pallas_src>
import math

import jax
import jax.numpy as jnp
from jax.experimental import pallas as pl
from jax.experimental.pallas import tpu as pltpu


def _round_up(x, m):
    return ((x + m - 1) // m) * m


def _discriminator_kernel(x_ref, w1_ref, b1_ref, w2_ref, b2_ref, out_ref):
    # x_ref:  (TILE_B, F)     bf16
    # w1_ref: (F, H_pad)      bf16
    # b1_ref: (1, H_pad)      f32
    # w2_ref: (1, H_pad)      f32   (W2 transposed to a row, zero-padded)
    # b2_ref: (1, 1)          f32   (SMEM scalar)
    # out_ref:(TILE_B, 1)     f32
    h = jnp.dot(x_ref[...], w1_ref[...], preferred_element_type=jnp.float32)
    h = jnp.maximum(h + b1_ref[...], 0.0)  # ReLU (f32 on VPU)
    # Second linear layer has N=1: do it as VPU multiply + XLU lane reduce instead of an MXU op.
    logits = jnp.sum(h * w2_ref[...], axis=-1, keepdims=True) + b2_ref[0, 0]
    out_ref[...] = jax.nn.sigmoid(logits).astype(out_ref.dtype)


def discriminator_forward(x, w1, b1, w2, b2, *, tile_b=512):
    """x: (B, F); w1: (F, H); b1: (1, H); w2: (H, 1); b2: (1, 1)  ->  (B, 1) float32."""
    B, F = x.shape
    H = w1.shape[1]

    # --- layout prep in the wrapper (all exact-zero padding: bit-identical math) ---
    H_pad = _round_up(max(H, 1), 128)
    tile_b = min(tile_b, _round_up(B, 8))          # don't over-pad tiny batches
    B_pad = _round_up(B, tile_b)

    x_p = x
    if B_pad != B:
        x_p = jnp.pad(x_p, ((0, B_pad - B), (0, 0)))
    x_bf16 = x_p.astype(jnp.bfloat16)                               # (B_pad, F)

    w1_p = jnp.pad(w1, ((0, 0), (0, H_pad - H))).astype(jnp.bfloat16)  # (F, H_pad)
    b1_p = jnp.pad(b1, ((0, 0), (0, H_pad - H))).astype(jnp.float32)   # (1, H_pad)
    w2_row = jnp.pad(w2.reshape(1, H), ((0, 0), (0, H_pad - H))).astype(jnp.float32)  # (1, H_pad)
    b2_s = b2.reshape(1, 1).astype(jnp.float32)                        # (1, 1) -> SMEM

    num_tiles = B_pad // tile_b

    cost = pl.CostEstimate(
        flops=2 * B_pad * F * H_pad + 3 * B_pad * H_pad,
        transcendentals=B_pad,  # sigmoid
        bytes_accessed=(x_bf16.size * 2 + w1_p.size * 2 + b1_p.size * 4
                        + w2_row.size * 4 + 4 + B_pad * 4),
    )

    out_pad = pl.pallas_call(
        _discriminator_kernel,
        out_shape=jax.ShapeDtypeStruct((B_pad, 1), jnp.float32),
        grid=(num_tiles,),
        in_specs=[
            pl.BlockSpec((tile_b, F), lambda i: (i, 0)),      # x tile (pipelined)
            pl.BlockSpec((F, H_pad), lambda i: (0, 0)),       # W1 (resident)
            pl.BlockSpec((1, H_pad), lambda i: (0, 0)),       # b1 (resident)
            pl.BlockSpec((1, H_pad), lambda i: (0, 0)),       # W2 row (resident)
            pl.BlockSpec(memory_space=pltpu.MemorySpace.SMEM),  # b2 scalar
        ],
        out_specs=pl.BlockSpec((tile_b, 1), lambda i: (i, 0)),
        compiler_params=pltpu.CompilerParams(
            dimension_semantics=("parallel",),
            vmem_limit_bytes=32 * 1024 * 1024,
        ),
        cost_estimate=cost,
    )(x_bf16, w1_p, b1_p, w2_row, b2_s)

    return out_pad[:B]


def init_discriminator_params(key, feature_size, data_num):
    """Deterministic kaiming_normal (fan_in) init matching the module's shapes."""
    intermediate = math.ceil(math.sqrt(data_num))
    k1, k2 = jax.random.split(key, 2)

    # block1: Linear(feature_size, intermediate), kaiming_normal fan_in, relu gain=sqrt(2)
    std1 = math.sqrt(2.0) / math.sqrt(feature_size)
    w1 = jax.random.normal(k1, (feature_size, intermediate), jnp.float32) * std1
    b1 = jnp.zeros((1, intermediate), jnp.float32)

    # block2: Linear(intermediate, 1), kaiming_normal fan_in, sigmoid gain=1
    std2 = 1.0 / math.sqrt(intermediate)
    w2 = jax.random.normal(k2, (intermediate, 1), jnp.float32) * std2
    b2 = jnp.zeros((1, 1), jnp.float32)

    return w1, b1, w2, b2


def reference_forward(x, w1, b1, w2, b2):
    h = jnp.maximum(x @ w1 + b1, 0.0)
    return jax.nn.sigmoid(h @ w2 + b2)


if __name__ == "__main__":
    key = jax.random.PRNGKey(0)
    k_x, k_p = jax.random.split(key)

    batch = 8
    feature_size = 32
    data_num = 64  # intermediate = ceil(sqrt(64)) = 8

    x = jax.random.normal(k_x, (batch, feature_size), jnp.float32)
    w1, b1, w2, b2 = init_discriminator_params(k_p, feature_size, data_num)

    out = discriminator_forward(x, w1, b1, w2, b2)
    out = jax.block_until_ready(out)

    ref = reference_forward(x, w1, b1, w2, b2)
    assert out.shape == (batch, 1)
    # bf16 MXU operands (f32 accumulation) vs f32 reference -> slightly looser tolerance.
    assert jnp.allclose(out, ref, atol=2e-2, rtol=2e-2)

    print("KERNEL_OK")
</pallas_src>

<mosaic_0001>
module attributes {stable_mosaic.version = 11 : i64} {
  func.func @_discriminator_kernel(%arg0: i32, %arg1: memref<8x32xbf16, #tpu.memory_space<vmem>>, %arg2: memref<32x128xbf16, #tpu.memory_space<vmem>>, %arg3: memref<1x128xf32, #tpu.memory_space<vmem>>, %arg4: memref<1x128xf32, #tpu.memory_space<vmem>>, %arg5: memref<1x1xf32, #tpu.memory_space<smem>>, %arg6: memref<8x1xf32, #tpu.memory_space<vmem>>) attributes {dimension_semantics = [#tpu.dimension_semantics<parallel>], iteration_bounds = array<i64: 1>, scalar_prefetch = 0 : i64, scratch_operands = 0 : i64, tpu.core_type = #tpu.core_type<tc>, window_params = [{transform_indices = @transform_0, window_bounds = array<i64: 8, 32>}, {pipeline_mode = #tpu.pipeline_mode<synchronous>, transform_indices = @transform_1, window_bounds = array<i64: 32, 128>}, {pipeline_mode = #tpu.pipeline_mode<synchronous>, transform_indices = @transform_2, window_bounds = array<i64: 1, 128>}, {pipeline_mode = #tpu.pipeline_mode<synchronous>, transform_indices = @transform_3, window_bounds = array<i64: 1, 128>}, {transform_indices = @transform_4, window_bounds = array<i64: 1, 1>}, {transform_indices = @transform_5, window_bounds = array<i64: 8, 1>}]} {
    %c0 = arith.constant 0 : index
    %c0_0 = arith.constant 0 : index
    %0 = vector.load %arg1[%c0, %c0_0] : memref<8x32xbf16, #tpu.memory_space<vmem>>, vector<8x32xbf16>
    %c0_1 = arith.constant 0 : index
    %c0_2 = arith.constant 0 : index
    %1 = vector.load %arg2[%c0_1, %c0_2] : memref<32x128xbf16, #tpu.memory_space<vmem>>, vector<32x128xbf16>
    %cst = arith.constant dense<0.000000e+00> : vector<8x128xf32>
    %2 = tpu.matmul %0, %1, %cst {dimension_numbers = #tpu.dot_dimension_numbers<[1], [0], [0], [1], [0, 0, 1, 1], [], []>} : vector<8x32xbf16>, vector<32x128xbf16>, vector<8x128xf32> -> vector<8x128xf32>
    %c0_3 = arith.constant 0 : index
    %c0_4 = arith.constant 0 : index
    %3 = vector.load %arg3[%c0_3, %c0_4] : memref<1x128xf32, #tpu.memory_space<vmem>>, vector<1x128xf32>
    %4 = vector.broadcast %3 : vector<1x128xf32> to vector<8x128xf32>
    %5 = arith.addf %2, %4 : vector<8x128xf32>
    %cst_5 = arith.constant 0.000000e+00 : f32
    %6 = vector.broadcast %cst_5 : f32 to vector<8x128xf32>
    %7 = arith.maximumf %5, %6 : vector<8x128xf32>
    %c0_6 = arith.constant 0 : index
    %c0_7 = arith.constant 0 : index
    %8 = vector.load %arg4[%c0_6, %c0_7] : memref<1x128xf32, #tpu.memory_space<vmem>>, vector<1x128xf32>
    %9 = vector.broadcast %8 : vector<1x128xf32> to vector<8x128xf32>
    %10 = arith.mulf %7, %9 : vector<8x128xf32>
    %cst_8 = arith.constant dense<0.000000e+00> : vector<8xf32>
    %11 = vector.multi_reduction <add>, %10, %cst_8 [1] : vector<8x128xf32> to vector<8xf32>
    %12 = vector.shape_cast %11 : vector<8xf32> to vector<8x1xf32>
    %c0_9 = arith.constant 0 : index
    %c0_10 = arith.constant 0 : index
    %13 = memref.load %arg5[%c0_9, %c0_10] : memref<1x1xf32, #tpu.memory_space<smem>>
    %14 = vector.broadcast %13 : f32 to vector<8x1xf32>
    %15 = arith.addf %12, %14 : vector<8x1xf32>
    %16 = arith.negf %15 : vector<8x1xf32>
    %17 = math.exp %16 : vector<8x1xf32>
    %cst_11 = arith.constant 1.000000e+00 : f32
    %18 = vector.broadcast %cst_11 : f32 to vector<8x1xf32>
    %19 = arith.addf %18, %17 : vector<8x1xf32>
    %20 = arith.divf %18, %19 : vector<8x1xf32>
    %c0_12 = arith.constant 0 : index
    %c0_13 = arith.constant 0 : index
    %21 = vector.load %arg6[%c0_12, %c0_13] : memref<8x1xf32, #tpu.memory_space<vmem>>, vector<8x1xf32>
    tpu.vector_store %arg6[%c0_12, %c0_13], %20 {strides = array<i32>} : memref<8x1xf32, #tpu.memory_space<vmem>>, vector<8x1xf32>,
    return
  }
  func.func @transform_0(%arg0: i32) -> (i32, i32) {
    %c0_i32 = arith.constant 0 : i32
    %c0_i32_0 = arith.constant 0 : i32
    return %arg0, %c0_i32 : i32, i32
  }
  func.func @transform_1(%arg0: i32) -> (i32, i32) {
    %c0_i32 = arith.constant 0 : i32
    %c0_i32_0 = arith.constant 0 : i32
    %c0_i32_1 = arith.constant 0 : i32
    return %c0_i32, %c0_i32_0 : i32, i32
  }
  func.func @transform_2(%arg0: i32) -> (i32, i32) {
    %c0_i32 = arith.constant 0 : i32
    %c0_i32_0 = arith.constant 0 : i32
    %c0_i32_1 = arith.constant 0 : i32
    return %c0_i32, %c0_i32_0 : i32, i32
  }
  func.func @transform_3(%arg0: i32) -> (i32, i32) {
    %c0_i32 = arith.constant 0 : i32
    %c0_i32_0 = arith.constant 0 : i32
    %c0_i32_1 = arith.constant 0 : i32
    return %c0_i32, %c0_i32_0 : i32, i32
  }
  func.func @transform_4(%arg0: i32) -> (i32, i32) {
    %c0_i32 = arith.constant 0 : i32
    %c0_i32_0 = arith.constant 0 : i32
    %c0_i32_1 = arith.constant 0 : i32
    return %c0_i32, %c0_i32_0 : i32, i32
  }
  func.func @transform_5(%arg0: i32) -> (i32, i32) {
    %c0_i32 = arith.constant 0 : i32
    %c0_i32_0 = arith.constant 0 : i32
    return %arg0, %c0_i32 : i32, i32
  }
}

</mosaic_0001>

<llo_original>
// kernel: tpu_custom_call.1
$region0: #{tpu_custom_call.1}
  #allocation0 [shape = 'u32[]', space=smem, size = 0x4, offset = 0x4, fixed_abs, tag = 'smem constant byte address 0x4 - core index']
  #allocation1 [shape = 'u32[144,128]{1,0:T(1,128)}', space=vmem, size = 0x12000, scoped, tag = 'internal scratch']
  #allocation2 [shape = 'f32[1,1]{1,0:T(1,128)S(6)}', space=smem, size = 0x200, scoped, tag = 'scoped memory for tpu_custom_call.1']
  %s0 = inlined_call_operand.hbm [shape: bf16[8,32], index: 0, kind: input, shape index: {}]
  %s1 = inlined_call_operand.hbm [shape: bf16[32,128], index: 1, kind: input, shape index: {}]
  %s2 = inlined_call_operand.vmem [shape: f32[1,128], index: 2, kind: input, shape index: {}]
  %s3 = inlined_call_operand.vmem [shape: f32[1,128], index: 3, kind: input, shape index: {}]
  %s4 = inlined_call_operand.<no memory space> [shape: f32[1,1], index: 4, kind: input, shape index: {}]
  %s5 = inlined_call_operand.vmem [shape: f32[8,1], index: 5, kind: output, shape index: {}]
  %s6 = sld [smem:[#allocation0]]
  $region38: #{tpu_custom_call.1} parent=0
    _
  %s8 = ssub.s32 1, %s6
  %s9 = scalar_select 0, %s8, %s6
  %10 = sst [smem:[#allocation2]] %s4
  $region1: #{tpu_custom_call.1} parent=0
    #allocation3 [shape = 'u8[2048]{0}', space=vmem, size = 0x800, scoped, tag = 'input window, operand 0, single buffered']
    #allocation4 [shape = 's32[1]{0}', space=sflag, size = 0x4, scoped, tag = 'scoped memory for tpu_custom_call.1']
    #allocation5 [shape = 'u8[8192]{0}', space=vmem, size = 0x2000, scoped, tag = 'input window, operand 1, single buffered']
    #allocation6 [shape = 's32[1]{0}', space=sflag, size = 0x4, scoped, tag = 'scoped memory for tpu_custom_call.1']
    %11 = vsyncpa [#allocation4], 0
    %12 = vsyncpa [#allocation6], 0
    // Predicated region
    $region2: #{tpu_custom_call.1} parent=1 // pred_check
      _
    $region3: #{tpu_custom_call.1} parent=1 // pred_check_branch
      %14 = sbr.rel (0) target = $region5
    $region4: #{tpu_custom_call.1} parent=1 // pred_region
      %s16 = ssub.s32 64, 64
      %17 = vsyncadd [#allocation4], %s16
      %s19 = sshll.u32 [#allocation3], 4
      %s20 = int_to_ptr.vmem [resolvable:$true] %s19
      %22 = dma.hbm_to_vmem [thread:$0]  %s0, 64, %s20, [#allocation4]
    $region5: #{tpu_custom_call.1} parent=1 // pred_fallthru
      _
    // Predicated region
    $region6: #{tpu_custom_call.1} parent=1 // pred_check
      _
    $region7: #{tpu_custom_call.1} parent=1 // pred_check_branch
      %24 = sbr.rel (0) target = $region9
    $region8: #{tpu_custom_call.1} parent=1 // pred_region
      %s26 = ssub.s32 256, 256
      %27 = vsyncadd [#allocation6], %s26
      %s28 = sshll.u32 [#allocation5], 4
      %s29 = int_to_ptr.vmem [resolvable:$true] %s28
      %34 = dma.hbm_to_vmem [thread:$0]  %s1, 256, %s29, [#allocation6], 64, 64, 4
    $region9: #{tpu_custom_call.1} parent=1 // pred_fallthru
      _
    // Predicated region
    $region10: #{tpu_custom_call.1} parent=1 // pred_check
      _
    $region11: #{tpu_custom_call.1} parent=1 // pred_check_branch
      %36 = sbr.rel (0) target = $region13
    $region12: #{tpu_custom_call.1} parent=1 // pred_region
      _
    $region13: #{tpu_custom_call.1} parent=1 // pred_fallthru
      _
    // Predicated region
    $region14: #{tpu_custom_call.1} parent=1 // pred_check
      _
    $region15: #{tpu_custom_call.1} parent=1 // pred_check_branch
      %38 = sbr.rel (0) target = $region17
    $region16: #{tpu_custom_call.1} parent=1 // pred_region
      _
    $region17: #{tpu_custom_call.1} parent=1 // pred_fallthru
      _
    // Predicated region
    $region18: #{tpu_custom_call.1} parent=1 // pred_check
      _
    $region19: #{tpu_custom_call.1} parent=1 // pred_check_branch
      %40 = sbr.rel (0) target = $region21
    $region20: #{tpu_custom_call.1} parent=1 // pred_region
      _
    $region21: #{tpu_custom_call.1} parent=1 // pred_fallthru
      _
    // Predicated region
    $region22: #{tpu_custom_call.1} parent=1 // pred_check
      _
    $region23: #{tpu_custom_call.1} parent=1 // pred_check_branch
      %42 = sbr.rel (0) target = $region25
    $region24: #{tpu_custom_call.1} parent=1 // pred_region
      %43 = dma.done [#allocation4], 64
    $region25: #{tpu_custom_call.1} parent=1 // pred_fallthru
      _
    // Predicated region
    $region26: #{tpu_custom_call.1} parent=1 // pred_check
      _
    $region27: #{tpu_custom_call.1} parent=1 // pred_check_branch
      %45 = sbr.rel (0) target = $region29
    $region28: #{tpu_custom_call.1} parent=1 // pred_region
      %46 = dma.done [#allocation6], 256
    $region29: #{tpu_custom_call.1} parent=1 // pred_fallthru
      _
    %v48 = vld [vmem:[#allocation3] sm:$0xf]
    %v49 = vld [vmem:[#allocation5] sm:$0xf]
    %v50 = vld [vmem:[#allocation5 + $0x4] sm:$0xf]
    %v51 = vld [vmem:[#allocation5 + $0x8] sm:$0xf]
    %v52 = vld [vmem:[#allocation5 + $0xc] sm:$0xf]
    %v53 = vld [vmem:[%s2] sm:$0x1]
    %v55 = vlaneseq
    %v56 = vshrl.u32 %v55, 7
    %v57 = vsub.s32 0, %v56
    %v58 = vrot.slane %v53, %v57
    %v64 = vunpack.c.l.b16 %v49
    %v65 = vunpack.c.l.b16 %v50
    %v66 = vunpack.c.l.b16 %v51
    %v67 = vunpack.c.l.b16 %v52
    %v68 = vpack.c.b16 %v65, %v64
    %v69 = vpack.c.b16 %v67, %v66
    %vm72 = vcmask 261120
    %v74 = vsel %vm72, %v48, 0
    %76 = vmatprep.subr.bf16.mxu0 0
    %77 = vmatpush1.bf16.msra.mxu0 %v68
    %78 = vmatprep.subr.bf16.mxu0 0
    %79 = vmatpush1.bf16.msra.mxu0 %v69
    %80 = vmatprep.subr.bf16.mxu0 0
    %81 = vmatpush1.bf16.msra.mxu0 0
    %82 = vmatprep.subr.bf16.mxu0 0
    %83 = vmatpush1.bf16.msra.mxu0 0
    %84 = vmatprep.subr.bf16.mxu0 0
    %85 = vmatpush1.bf16.msra.mxu0 0
    %86 = vmatprep.subr.bf16.mxu0 0
    %87 = vmatpush1.bf16.msra.mxu0 0
    %88 = vmatprep.subr.bf16.mxu0 0
    %89 = vmatpush1.bf16.msra.mxu0 0
    %90 = vmatprep.subr.bf16.mxu0 0
    %91 = vmatpush1.bf16.msra.mxu0 0
    %92 = vmatprep.subr.bf16.mxu0 0
    %93 = vmatpush1.bf16.msra.mxu0 0
    %94 = vmatprep.subr.bf16.mxu0 0
    %95 = vmatpush1.bf16.msra.mxu0 0
    %96 = vmatprep.subr.bf16.mxu0 0
    %97 = vmatpush1.bf16.msra.mxu0 0
    %98 = vmatprep.subr.bf16.mxu0 0
    %99 = vmatpush1.bf16.msra.mxu0 0
    %100 = vmatprep.subr.bf16.mxu0 0
    %101 = vmatpush1.bf16.msra.mxu0 0
    %102 = vmatprep.subr.bf16.mxu0 0
    %103 = vmatpush1.bf16.msra.mxu0 0
    %104 = vmatprep.subr.bf16.mxu0 0
    %105 = vmatpush1.bf16.msra.mxu0 0
    %106 = vmatprep.subr.bf16.mxu0 0
    %107 = vmatpush1.bf16.msra.mxu0 0
    %108 = vmatprep.mubr.bf16.mxu0 0
    %109 = vmatmul.mubr.bf16.gmra.mrb[0].mxu0 %v74
    %v110 = vpop.f32.mrb[0].mxu0
    %v111 = vadd.f32 %v58, %v110
    %v112 = vpop.f32.mrb[0].mxu0
    %v113 = vpop.f32.mrb[0].mxu0
    %v114 = vpop.f32.mrb[0].mxu0
    %115 = vdwg.mxu0
    %v116 = vmax.f32 %v111, 0.0
    %v117 = vld [vmem:[%s3] sm:$0x1]
    %v119 = vlaneseq
    %v120 = vshrl.u32 %v119, 7
    %v121 = vsub.s32 0, %v120
    %v122 = vrot.slane %v117, %v121
    %v124 = vmul.f32 %v116, %v122
    %125 = vadd.xlane.f32.xlu0 %v124
    %v126 = vpop.xlane.xlu0 %125
    %s127 = sld [smem:[#allocation2]]
    %v128 = vstv %s127
    %v129 = vadd.f32 %v126, %v128
    %v130 = vxor.u32 %v129, 2147483648
    %v131 = vmul.f32 %v130, 1.442695
    %v132 = vpow.pop %v131
    %v133 = vadd.f32 %v132, 1.0
    %v134 = vrcp.pop %v133
    %v135 = vmul.f32 1.0, %v134
    %vm136 = vcmask 7168
    %137 = vst.msk [vmem:[%s5] sm:$0xff] %vm136, %v135
    // Predicated region
    $region30: #{tpu_custom_call.1} parent=1 // pred_check
      _
    $region31: #{tpu_custom_call.1} parent=1 // pred_check_branch
      %139 = sbr.rel (0) target = $region33
    $region32: #{tpu_custom_call.1} parent=1 // pred_region
      _
    $region33: #{tpu_custom_call.1} parent=1 // pred_fallthru
      _
    // Predicated region
    $region34: #{tpu_custom_call.1} parent=1 // pred_check
      _
    $region35: #{tpu_custom_call.1} parent=1 // pred_check_branch
      %141 = sbr.rel (0) target = $region37
    $region36: #{tpu_custom_call.1} parent=1 // pred_region
      _
    $region37: #{tpu_custom_call.1} parent=1 // pred_fallthru
      _
    %142 = vsyncpa [#allocation4], 1
    %143 = vsyncpa [#allocation6], 1

</llo_original>
